<compile_context>
chip_gen: v6e
topology: v6e:2x2x1
jax: 0.10.0
libtpu: 0.0.40
codegen_flags: <defaults>
</compile_context>

<pallas_src>
import functools

import jax
import jax.numpy as jnp
from jax.experimental import pallas as pl
from jax.experimental.pallas import tpu as pltpu


def _row_sum_kernel(x_ref, o_ref, *, H, W, acc_dtype):
    # x_ref: (TM, H*W) lane-dense tile in VMEM; o_ref: (TM, W)
    # TODO(synk): for very large H, switch this unrolled loop to a
    #             lax.fori_loop over H-chunks to bound code size.
    acc = x_ref[:, 0:W].astype(acc_dtype)
    for h in range(1, H):  # unrolled VPU adds; fully hidden under the input DMA
        acc = acc + x_ref[:, h * W:(h + 1) * W].astype(acc_dtype)
    o_ref[...] = acc.astype(o_ref.dtype)


def _pick_row_tile(R, F, W, itemsize, budget_bytes=8 << 20, max_rows=1024):
    # Budget: double-buffered input tile + double-buffered output tile per row.
    per_row_bytes = 2 * F * itemsize + 2 * W * itemsize
    tm = max(budget_bytes // per_row_bytes, 8)
    tm = min(tm, max_rows, R)
    if tm < R:
        # Must be a multiple of 8 unless it equals the full row extent.
        tm = max((tm // 8) * 8, 8)
    return int(tm)


def dconv_menb_forward(x):
    """Pallas TPU implementation of DConvMenb.forward: sum over axis 2.

    x: [B, C, H, W]  ->  [B, C, W]   (== torch.sum(x, 2))
    """
    B, C, H, W = x.shape
    R, F = B * C, H * W

    x2 = x.reshape(R, F)  # free view of contiguous NCHW
    itemsize = jnp.dtype(x.dtype).itemsize
    tm = _pick_row_tile(R, F, W, itemsize)
    grid = (pl.cdiv(R, tm),)

    acc_dtype = jnp.float32 if jnp.issubdtype(x.dtype, jnp.inexact) else jnp.int32
    kernel = functools.partial(_row_sum_kernel, H=H, W=W, acc_dtype=acc_dtype)

    out2 = pl.pallas_call(
        kernel,
        out_shape=jax.ShapeDtypeStruct((R, W), x.dtype),
        grid_spec=pltpu.PrefetchScalarGridSpec(
            num_scalar_prefetch=0,
            grid=grid,
            in_specs=[pl.BlockSpec((tm, F), lambda i: (i, 0))],
            out_specs=pl.BlockSpec((tm, W), lambda i: (i, 0)),
        ),
        compiler_params=pltpu.CompilerParams(
            dimension_semantics=("parallel",),
        ),
    )(x2)

    return out2.reshape(B, C, W)


if __name__ == "__main__":
    key = jax.random.PRNGKey(0)
    x = jax.random.normal(key, (2, 4, 16, 16), dtype=jnp.float32)

    out = dconv_menb_forward(x)
    out = jax.block_until_ready(out)

    # correctness check against plain-JAX reference (== torch.sum(x, 2))
    ref = jnp.sum(x, axis=2)
    assert out.shape == ref.shape, (out.shape, ref.shape)
    assert jnp.allclose(out, ref, atol=1e-5, rtol=1e-5), float(
        jnp.max(jnp.abs(out - ref)))

    print("KERNEL_OK")
</pallas_src>

<mosaic_0001>
module attributes {stable_mosaic.version = 11 : i64} {
  func.func @_row_sum_kernel(%arg0: i32, %arg1: memref<8x256xf32, #tpu.memory_space<vmem>>, %arg2: memref<8x16xf32, #tpu.memory_space<vmem>>) attributes {dimension_semantics = [#tpu.dimension_semantics<parallel>], iteration_bounds = array<i64: 1>, scalar_prefetch = 0 : i64, scratch_operands = 0 : i64, tpu.core_type = #tpu.core_type<tc>, window_params = [{transform_indices = @transform_0, window_bounds = array<i64: 8, 256>}, {transform_indices = @transform_1, window_bounds = array<i64: 8, 16>}]} {
    %c0 = arith.constant 0 : index
    %c0_0 = arith.constant 0 : index
    %0 = vector.load %arg1[%c0, %c0_0] : memref<8x256xf32, #tpu.memory_space<vmem>>, vector<8x16xf32>
    %c0_1 = arith.constant 0 : index
    %c16 = arith.constant 16 : index
    %1 = vector.load %arg1[%c0_1, %c16] : memref<8x256xf32, #tpu.memory_space<vmem>>, vector<8x16xf32>
    %2 = arith.addf %0, %1 : vector<8x16xf32>
    %c0_2 = arith.constant 0 : index
    %c32 = arith.constant 32 : index
    %3 = vector.load %arg1[%c0_2, %c32] : memref<8x256xf32, #tpu.memory_space<vmem>>, vector<8x16xf32>
    %4 = arith.addf %2, %3 : vector<8x16xf32>
    %c0_3 = arith.constant 0 : index
    %c48 = arith.constant 48 : index
    %5 = vector.load %arg1[%c0_3, %c48] : memref<8x256xf32, #tpu.memory_space<vmem>>, vector<8x16xf32>
    %6 = arith.addf %4, %5 : vector<8x16xf32>
    %c0_4 = arith.constant 0 : index
    %c64 = arith.constant 64 : index
    %7 = vector.load %arg1[%c0_4, %c64] : memref<8x256xf32, #tpu.memory_space<vmem>>, vector<8x16xf32>
    %8 = arith.addf %6, %7 : vector<8x16xf32>
    %c0_5 = arith.constant 0 : index
    %c80 = arith.constant 80 : index
    %9 = vector.load %arg1[%c0_5, %c80] : memref<8x256xf32, #tpu.memory_space<vmem>>, vector<8x16xf32>
    %10 = arith.addf %8, %9 : vector<8x16xf32>
    %c0_6 = arith.constant 0 : index
    %c96 = arith.constant 96 : index
    %11 = vector.load %arg1[%c0_6, %c96] : memref<8x256xf32, #tpu.memory_space<vmem>>, vector<8x16xf32>
    %12 = arith.addf %10, %11 : vector<8x16xf32>
    %c0_7 = arith.constant 0 : index
    %c112 = arith.constant 112 : index
    %13 = vector.load %arg1[%c0_7, %c112] : memref<8x256xf32, #tpu.memory_space<vmem>>, vector<8x16xf32>
    %14 = arith.addf %12, %13 : vector<8x16xf32>
    %c0_8 = arith.constant 0 : index
    %c128 = arith.constant 128 : index
    %15 = vector.load %arg1[%c0_8, %c128] : memref<8x256xf32, #tpu.memory_space<vmem>>, vector<8x16xf32>
    %16 = arith.addf %14, %15 : vector<8x16xf32>
    %c0_9 = arith.constant 0 : index
    %c144 = arith.constant 144 : index
    %17 = vector.load %arg1[%c0_9, %c144] : memref<8x256xf32, #tpu.memory_space<vmem>>, vector<8x16xf32>
    %18 = arith.addf %16, %17 : vector<8x16xf32>
    %c0_10 = arith.constant 0 : index
    %c160 = arith.constant 160 : index
    %19 = vector.load %arg1[%c0_10, %c160] : memref<8x256xf32, #tpu.memory_space<vmem>>, vector<8x16xf32>
    %20 = arith.addf %18, %19 : vector<8x16xf32>
    %c0_11 = arith.constant 0 : index
    %c176 = arith.constant 176 : index
    %21 = vector.load %arg1[%c0_11, %c176] : memref<8x256xf32, #tpu.memory_space<vmem>>, vector<8x16xf32>
    %22 = arith.addf %20, %21 : vector<8x16xf32>
    %c0_12 = arith.constant 0 : index
    %c192 = arith.constant 192 : index
    %23 = vector.load %arg1[%c0_12, %c192] : memref<8x256xf32, #tpu.memory_space<vmem>>, vector<8x16xf32>
    %24 = arith.addf %22, %23 : vector<8x16xf32>
    %c0_13 = arith.constant 0 : index
    %c208 = arith.constant 208 : index
    %25 = vector.load %arg1[%c0_13, %c208] : memref<8x256xf32, #tpu.memory_space<vmem>>, vector<8x16xf32>
    %26 = arith.addf %24, %25 : vector<8x16xf32>
    %c0_14 = arith.constant 0 : index
    %c224 = arith.constant 224 : index
    %27 = vector.load %arg1[%c0_14, %c224] : memref<8x256xf32, #tpu.memory_space<vmem>>, vector<8x16xf32>
    %28 = arith.addf %26, %27 : vector<8x16xf32>
    %c0_15 = arith.constant 0 : index
    %c240 = arith.constant 240 : index
    %29 = vector.load %arg1[%c0_15, %c240] : memref<8x256xf32, #tpu.memory_space<vmem>>, vector<8x16xf32>
    %30 = arith.addf %28, %29 : vector<8x16xf32>
    %c0_16 = arith.constant 0 : index
    %c0_17 = arith.constant 0 : index
    %31 = vector.load %arg2[%c0_16, %c0_17] : memref<8x16xf32, #tpu.memory_space<vmem>>, vector<8x16xf32>
    tpu.vector_store %arg2[%c0_16, %c0_17], %30 {strides = array<i32>} : memref<8x16xf32, #tpu.memory_space<vmem>>, vector<8x16xf32>,
    return
  }
  func.func @transform_0(%arg0: i32) -> (i32, i32) {
    %c0_i32 = arith.constant 0 : i32
    %c0_i32_0 = arith.constant 0 : i32
    return %arg0, %c0_i32 : i32, i32
  }
  func.func @transform_1(%arg0: i32) -> (i32, i32) {
    %c0_i32 = arith.constant 0 : i32
    %c0_i32_0 = arith.constant 0 : i32
    return %arg0, %c0_i32 : i32, i32
  }
}

</mosaic_0001>

<llo_original>
// kernel: tpu_custom_call.1
$region0: #{tpu_custom_call.1}
  #allocation0 [shape = 'u32[]', space=smem, size = 0x4, offset = 0x4, fixed_abs, tag = 'smem constant byte address 0x4 - core index']
  #allocation1 [shape = 'u32[144,128]{1,0:T(1,128)}', space=vmem, size = 0x12000, scoped, tag = 'internal scratch']
  %s0 = inlined_call_operand.hbm [shape: f32[8,256], index: 0, kind: input, shape index: {}]
  %s1 = inlined_call_operand.hbm [shape: f32[8,16], index: 1, kind: output, shape index: {}]
  %s2 = sld [smem:[#allocation0]]
  $region18: #{tpu_custom_call.1} parent=0
    _
  %s4 = ssub.s32 1, %s2
  %s5 = scalar_select 0, %s4, %s2
  $region1: #{tpu_custom_call.1} parent=0
    #allocation2 [shape = 'u8[8192]{0}', space=vmem, size = 0x2000, scoped, tag = 'input window, operand 0, single buffered']
    #allocation3 [shape = 's32[1]{0}', space=sflag, size = 0x4, scoped, tag = 'scoped memory for tpu_custom_call.1']
    #allocation4 [shape = 's32[1]{0}', space=sflag, size = 0x4, scoped, tag = 'scoped memory for tpu_custom_call.1']
    #allocation5 [shape = 'u8[4096]{0}', space=vmem, size = 0x1000, scoped, tag = 'output window, operand 0, single buffered']
    %6 = vsyncpa [#allocation3], 0
    %7 = vsyncpa [#allocation4], 0
    // Predicated region
    $region2: #{tpu_custom_call.1} parent=1 // pred_check
      _
    $region3: #{tpu_custom_call.1} parent=1 // pred_check_branch
      %9 = sbr.rel (0) target = $region5
    $region4: #{tpu_custom_call.1} parent=1 // pred_region
      %s11 = ssub.s32 256, 256
      %12 = vsyncadd [#allocation3], %s11
      %s14 = sshll.u32 [#allocation2], 4
      %s15 = int_to_ptr.vmem [resolvable:$true] %s14
      %17 = dma.hbm_to_vmem [thread:$0]  %s0, 256, %s15, [#allocation3]
    $region5: #{tpu_custom_call.1} parent=1 // pred_fallthru
      _
    // Predicated region
    $region6: #{tpu_custom_call.1} parent=1 // pred_check
      _
    $region7: #{tpu_custom_call.1} parent=1 // pred_check_branch
      %19 = sbr.rel (0) target = $region9
    $region8: #{tpu_custom_call.1} parent=1 // pred_region
      %20 = dma.done [#allocation3], 256
    $region9: #{tpu_custom_call.1} parent=1 // pred_fallthru
      _
    %v21 = vld [vmem:[#allocation2] sm:$0xff]
    %23 = vrot.lane.b32.xlu0 %v21, 112
    %v24 = vpop.permute.xlu0 %23
    %v26 = vadd.f32 %v21, %v24
    %27 = vrot.lane.b32.xlu0 %v21, 96
    %v28 = vpop.permute.xlu0 %27
    %v30 = vadd.f32 %v26, %v28
    %31 = vrot.lane.b32.xlu0 %v21, 80
    %v32 = vpop.permute.xlu0 %31
    %v34 = vadd.f32 %v30, %v32
    %35 = vrot.lane.b32.xlu0 %v21, 64
    %v36 = vpop.permute.xlu0 %35
    %v38 = vadd.f32 %v34, %v36
    %39 = vrot.lane.b32.xlu0 %v21, 48
    %v40 = vpop.permute.xlu0 %39
    %v42 = vadd.f32 %v38, %v40
    %43 = vrot.lane.b32.xlu0 %v21, 32
    %v44 = vpop.permute.xlu0 %43
    %v46 = vadd.f32 %v42, %v44
    %47 = vrot.lane.b32.xlu0 %v21, 16
    %v48 = vpop.permute.xlu0 %47
    %v50 = vadd.f32 %v46, %v48
    %v51 = vld [vmem:[#allocation2 + $0x8] sm:$0xff]
    %v52 = vadd.f32 %v50, %v51
    %54 = vrot.lane.b32.xlu0 %v51, 112
    %v55 = vpop.permute.xlu0 %54
    %v57 = vadd.f32 %v52, %v55
    %58 = vrot.lane.b32.xlu0 %v51, 96
    %v59 = vpop.permute.xlu0 %58
    %v61 = vadd.f32 %v57, %v59
    %62 = vrot.lane.b32.xlu0 %v51, 80
    %v63 = vpop.permute.xlu0 %62
    %v65 = vadd.f32 %v61, %v63
    %66 = vrot.lane.b32.xlu0 %v51, 64
    %v67 = vpop.permute.xlu0 %66
    %v69 = vadd.f32 %v65, %v67
    %70 = vrot.lane.b32.xlu0 %v51, 48
    %v71 = vpop.permute.xlu0 %70
    %v73 = vadd.f32 %v69, %v71
    %74 = vrot.lane.b32.xlu0 %v51, 32
    %v75 = vpop.permute.xlu0 %74
    %v77 = vadd.f32 %v73, %v75
    %78 = vrot.lane.b32.xlu0 %v51, 16
    %v79 = vpop.permute.xlu0 %78
    %v81 = vadd.f32 %v77, %v79
    %vm82 = vcmask 130048
    %83 = vst.msk [vmem:[#allocation5] sm:$0xff] %vm82, %v81
    // Predicated region
    $region10: #{tpu_custom_call.1} parent=1 // pred_check
      _
    $region11: #{tpu_custom_call.1} parent=1 // pred_check_branch
      %85 = sbr.rel (0) target = $region13
    $region12: #{tpu_custom_call.1} parent=1 // pred_region
      %s87 = ssub.s32 128, 128
      %88 = vsyncadd [#allocation4], %s87
      %s90 = sshll.u32 [#allocation5], 4
      %s91 = int_to_ptr.vmem [resolvable:$true] %s90
      %93 = dma.vmem_to_hbm [thread:$0]  %s91, 128, %s1, [#allocation4]
    $region13: #{tpu_custom_call.1} parent=1 // pred_fallthru
      _
    // Predicated region
    $region14: #{tpu_custom_call.1} parent=1 // pred_check
      _
    $region15: #{tpu_custom_call.1} parent=1 // pred_check_branch
      %95 = sbr.rel (0) target = $region17
    $region16: #{tpu_custom_call.1} parent=1 // pred_region
      %96 = dma.done [#allocation4], 128
    $region17: #{tpu_custom_call.1} parent=1 // pred_fallthru
      _
    %97 = vsyncpa [#allocation3], 1
    %98 = vsyncpa [#allocation4], 1

</llo_original>
